<compile_context>
chip_gen: v7x
topology: tpu7x:2x2x1
jax: 0.10.0
libtpu: 0.0.40
codegen_flags: <defaults>
</compile_context>

<pallas_src>
import functools

import jax
import jax.numpy as jnp
import numpy as np
from jax.experimental import pallas as pl
from jax.experimental.pallas import tpu as pltpu


def _conv_stats_kernel(x_ref, w_ref, y_ref, stat_ref, *,
                       H, W, Cin, Cout, KH, KW, pad, compute_dtype):
    """Pass 1: per-image conv + BN partial statistics.

    x_ref:    (1, Cin, H*W)       one image, flattened spatial on the lane axis
    w_ref:    (KH*KW, Cout, Cin)  conv weight, one (Cout, Cin) tile per tap
    y_ref:    (1, Cout, H*W)      conv output (pre-BN), f32
    stat_ref: (1, Cout, 2)        col 0 = sum(y), col 1 = sum((y - mean_img)^2)
    """
    HW = H * W
    xv = x_ref[0].astype(jnp.float32)                       # (Cin, HW)
    w_all = w_ref[...]                                      # (KH*KW, Cout, Cin)

    # Per-pixel (row, col) indices for border-validity masks, generated
    # in-kernel (no HBM mask input).
    idx = jax.lax.broadcasted_iota(jnp.int32, (1, HW), 1)
    if (W & (W - 1)) == 0:
        col = jnp.bitwise_and(idx, W - 1)
        row = jnp.right_shift(idx, (W - 1).bit_length())    # idx // W (pow2)
    else:
        # TODO(synk): if vector integer div is rejected for some shape, ship a
        # tiny (2, HW) int32 row/col index input instead.
        col = jax.lax.rem(idx, W)
        row = jax.lax.div(idx, W)

    # Direct conv: one small MXU dot per tap.  The per-tap spatial shift is a
    # lane rotation (XLU slot) of the resident input slab; positions that wrap
    # across row / image edges are zeroed by the border mask.  This scheme is
    # only valid for stride=1 / 'same' padding (asserted in the wrapper).
    acc = jnp.zeros((Cout, HW), jnp.float32)
    for kh in range(KH):
        dh = kh - pad
        for kw in range(KW):
            dw = kw - pad
            d = dh * W + dw                    # flat-index shift of this tap
            tap = kh * KW + kw
            xs = xv if d == 0 else pltpu.roll(xv, (-d) % HW, axis=1)
            conds = []
            if dh < 0:
                conds.append(row >= -dh)
            if dh > 0:
                conds.append(row < H - dh)
            if dw < 0:
                conds.append(col >= -dw)
            if dw > 0:
                conds.append(col < W - dw)
            if conds:
                valid = conds[0]
                for c in conds[1:]:
                    valid = valid & c
                xs = jnp.where(valid, xs, 0.0)               # zero padded taps
            w_tap = w_all[tap]                               # (Cout, Cin)
            acc = acc + jnp.dot(w_tap, xs.astype(compute_dtype),
                                preferred_element_type=jnp.float32)

    y_ref[0] = acc

    # BN partials: per-image sum and *centered* sum of squares (numerically
    # stable); combined across images in the wrapper.
    inv_hw = 1.0 / float(HW)
    s1 = jnp.sum(acc, axis=1, keepdims=True)                 # (Cout, 1)
    diff = acc - s1 * inv_hw
    ss = jnp.sum(diff * diff, axis=1, keepdims=True)         # (Cout, 1)
    stat_ref[0] = jnp.concatenate([s1, ss], axis=1)          # (Cout, 2)


def _bn_relu_kernel(y_ref, affine_ref, o_ref):
    """Pass 2: y * scale + shift, ReLU.  affine_ref: (Cout, 2) = [scale, shift]."""
    scale = affine_ref[:, 0:1]                               # (Cout, 1)
    shift = affine_ref[:, 1:2]
    o_ref[0] = jnp.maximum(y_ref[0] * scale + shift, 0.0).astype(o_ref.dtype)


def conv_block(x_nchw, weight_oihw, gamma, beta, *, stride=1, padding=1,
               eps=1e-5, compute_dtype=jnp.bfloat16):
    """ConvBlock.forward: ReLU(BatchNorm2d(Conv2d(x))).  stride=1, 'same' output."""
    N, Cin, H, W = x_nchw.shape
    Cout, Cin_w, KH, KW = weight_oihw.shape
    assert Cin == Cin_w
    assert stride == 1, "kernel implements the ConvBlock default stride=1"
    # The roll+mask tap formulation is only valid when output spatial == input
    # spatial (stride=1, 'same' padding); anything else would silently mix rows.
    assert H + 2 * padding - KH + 1 == H and W + 2 * padding - KW + 1 == W
    # TODO(synk): general stride / non-'same' padding needs a different indexing scheme.

    HW = H * W
    M = N * HW

    # Free reshape; per-grid-step BlockSpec delivers a lane-contiguous (Cin, HW)
    # slab, so no in-kernel relayout/concat is needed.
    x3 = x_nchw.reshape(N, Cin, HW).astype(jnp.float32)
    # (Cout,Cin,KH,KW) -> (KH*KW, Cout, Cin): one (Cout, Cin) weight tile per tap.
    w3 = jnp.transpose(weight_oihw, (2, 3, 0, 1)).reshape(KH * KW, Cout, Cin)
    w3 = w3.astype(compute_dtype)

    # VMEM guard: per grid step we hold double-buffered x/y blocks plus the f32
    # accumulator and a few rolled copies of the input slab.
    est_vmem = HW * 4 * (4 * Cin + 4 * Cout + 16)
    assert est_vmem < 28 * 1024 * 1024, (
        "per-image block too large for VMEM; "
        "TODO(synk): add intra-image spatial tiling (halo rows) for large H*W")
    cparams = pltpu.CompilerParams(
        dimension_semantics=("parallel",),            # megacore across images
        vmem_limit_bytes=32 * 1024 * 1024)

    # ---- Pass 1: conv + per-image BN partials (batch-tiled, pipelined). ----
    conv_kernel = functools.partial(
        _conv_stats_kernel, H=H, W=W, Cin=Cin, Cout=Cout, KH=KH, KW=KW,
        pad=padding, compute_dtype=compute_dtype)
    y_conv, partial = pl.pallas_call(
        conv_kernel,
        out_shape=(jax.ShapeDtypeStruct((N, Cout, HW), jnp.float32),
                   jax.ShapeDtypeStruct((N, Cout, 2), jnp.float32)),
        grid=(N,),
        in_specs=[
            pl.BlockSpec((1, Cin, HW), lambda n: (n, 0, 0)),
            pl.BlockSpec((KH * KW, Cout, Cin), lambda n: (0, 0, 0)),
        ],
        out_specs=(
            pl.BlockSpec((1, Cout, HW), lambda n: (n, 0, 0)),
            pl.BlockSpec((1, Cout, 2), lambda n: (n, 0, 0)),
        ),
        compiler_params=cparams,
    )(x3, w3)

    # ---- Combine per-image partials into global batch stats (tiny XLA ops). ----
    # Exact parallel-variance combination: SS = sum_i ss_i + n*(mean_i - mean)^2.
    s1 = partial[:, :, 0]                                    # (N, Cout)
    ss = partial[:, :, 1]                                    # (N, Cout)
    mean_img = s1 / float(HW)
    mean = jnp.sum(s1, axis=0) / float(M)                    # (Cout,)
    var = (jnp.sum(ss, axis=0)
           + float(HW) * jnp.sum((mean_img - mean) ** 2, axis=0)) / float(M)
    scale = gamma.astype(jnp.float32) * jax.lax.rsqrt(var + eps)
    shift = beta.astype(jnp.float32) - mean * scale
    affine = jnp.stack([scale, shift], axis=1)               # (Cout, 2)

    # ---- Pass 2: normalize + ReLU (batch-tiled, pipelined). ----
    out3 = pl.pallas_call(
        _bn_relu_kernel,
        out_shape=jax.ShapeDtypeStruct((N, Cout, HW), jnp.float32),
        grid=(N,),
        in_specs=[
            pl.BlockSpec((1, Cout, HW), lambda n: (n, 0, 0)),
            pl.BlockSpec((Cout, 2), lambda n: (0, 0)),
        ],
        out_specs=pl.BlockSpec((1, Cout, HW), lambda n: (n, 0, 0)),
        compiler_params=cparams,
    )(y_conv, affine)

    return out3.reshape(N, Cout, H, W)                       # free reshape


def _reference(x_nchw, weight_oihw, gamma, beta, *, padding=1, eps=1e-5):
    """Plain-JAX reference mirroring the PyTorch forward."""
    y = jax.lax.conv_general_dilated(
        x_nchw, weight_oihw, window_strides=(1, 1),
        padding=[(padding, padding), (padding, padding)],
        dimension_numbers=("NCHW", "OIHW", "NCHW"))
    mean = jnp.mean(y, axis=(0, 2, 3), keepdims=True)
    var = jnp.mean((y - mean) ** 2, axis=(0, 2, 3), keepdims=True)
    y = (y - mean) * jax.lax.rsqrt(var + eps)
    y = y * gamma.reshape(1, -1, 1, 1) + beta.reshape(1, -1, 1, 1)
    return jnp.maximum(y, 0.0)


if __name__ == "__main__":
    key = jax.random.PRNGKey(0)
    kx, kw, kg, kb = jax.random.split(key, 4)

    # Small shapes consistent with ConvBlock(in_channels=4, out_channels=8).
    N, Cin, H, W = 2, 4, 16, 16
    Cout, KH, KW = 8, 3, 3

    x = jax.random.normal(kx, (N, Cin, H, W), jnp.float32)
    weight = 0.1 * jax.random.normal(kw, (Cout, Cin, KH, KW), jnp.float32)  # conv weight (no bias: use_bn=True)
    gamma = 1.0 + 0.1 * jax.random.normal(kg, (Cout,), jnp.float32)          # BN weight
    beta = 0.1 * jax.random.normal(kb, (Cout,), jnp.float32)                 # BN bias

    ref = _reference(x, weight, gamma, beta)

    # f32 MXU-operand path: tight check of the conv/mask/BN structure.
    out_f32 = jax.block_until_ready(
        conv_block(x, weight, gamma, beta, compute_dtype=jnp.float32))
    np.testing.assert_allclose(np.asarray(out_f32), np.asarray(ref),
                               rtol=2e-3, atol=2e-3)

    # Default bf16 MXU-operand path (f32 accumulation): tolerance reflects bf16
    # operand rounding, not a structural error.
    out_bf16 = jax.block_until_ready(
        conv_block(x, weight, gamma, beta, compute_dtype=jnp.bfloat16))
    np.testing.assert_allclose(np.asarray(out_bf16), np.asarray(ref),
                               rtol=2e-2, atol=2e-2)

    print("KERNEL_OK")
</pallas_src>

<mosaic_0001>
module attributes {stable_mosaic.version = 11 : i64} {
  func.func @_conv_stats_kernel(%arg0: i32, %arg1: memref<1x4x256xf32, #tpu.memory_space<vmem>>, %arg2: memref<9x8x4xf32, #tpu.memory_space<vmem>>, %arg3: memref<1x8x256xf32, #tpu.memory_space<vmem>>, %arg4: memref<1x8x2xf32, #tpu.memory_space<vmem>>) attributes {dimension_semantics = [#tpu.dimension_semantics<parallel>], iteration_bounds = array<i64: 2>, scalar_prefetch = 0 : i64, scratch_operands = 0 : i64, tpu.core_type = #tpu.core_type<tc>, window_params = [{transform_indices = @transform_0, window_bounds = array<i64: 1, 4, 256>}, {pipeline_mode = #tpu.pipeline_mode<synchronous>, transform_indices = @transform_1, window_bounds = array<i64: 9, 8, 4>}, {transform_indices = @transform_2, window_bounds = array<i64: 1, 8, 256>}, {transform_indices = @transform_3, window_bounds = array<i64: 1, 8, 2>}]} {
    %c0 = arith.constant 0 : index
    %c0_0 = arith.constant 0 : index
    %c0_1 = arith.constant 0 : index
    %0 = vector.load %arg1[%c0, %c0_0, %c0_1] : memref<1x4x256xf32, #tpu.memory_space<vmem>>, vector<1x4x256xf32>
    %1 = vector.shape_cast %0 : vector<1x4x256xf32> to vector<4x256xf32>
    %c0_2 = arith.constant 0 : index
    %c0_3 = arith.constant 0 : index
    %c0_4 = arith.constant 0 : index
    %2 = vector.load %arg2[%c0_2, %c0_3, %c0_4] : memref<9x8x4xf32, #tpu.memory_space<vmem>>, vector<9x8x4xf32>
    %3 = tpu.iota {dimensions = array<i32: 1>} : vector<1x256xi32>
    %c15_i32 = arith.constant 15 : i32
    %4 = vector.broadcast %c15_i32 : i32 to vector<1x256xi32>
    %5 = arith.andi %3, %4 : vector<1x256xi32>
    %c4_i32 = arith.constant 4 : i32
    %6 = vector.broadcast %c4_i32 : i32 to vector<1x256xi32>
    %7 = arith.shrsi %3, %6 : vector<1x256xi32>
    %cst = arith.constant 0.000000e+00 : f32
    %8 = vector.broadcast %cst : f32 to vector<8x256xf32>
    %c17_i32 = arith.constant 17 : i32
    %9 = tpu.dynamic_rotate %1 by %c17_i32 dim 1 : vector<4x256xf32>, i32 -> vector<4x256xf32>
    %c1_i32 = arith.constant 1 : i32
    %10 = vector.broadcast %c1_i32 : i32 to vector<1x256xi32>
    %11 = arith.cmpi sge, %7, %10 : vector<1x256xi32>
    %c1_i32_5 = arith.constant 1 : i32
    %12 = vector.broadcast %c1_i32_5 : i32 to vector<1x256xi32>
    %13 = arith.cmpi sge, %5, %12 : vector<1x256xi32>
    %14 = arith.andi %11, %13 : vector<1x256xi1>
    %cst_6 = arith.constant 0.000000e+00 : f32
    %15 = vector.shape_cast %14 : vector<1x256xi1> to vector<1x256xi1>
    %16 = vector.broadcast %15 : vector<1x256xi1> to vector<4x256xi1>
    %17 = vector.broadcast %cst_6 : f32 to vector<4x256xf32>
    %18 = arith.select %16, %9, %17 : vector<4x256xi1>, vector<4x256xf32>
    %19 = vector.extract_strided_slice %2 {offsets = [0, 0, 0], sizes = [1, 8, 4], strides = [1, 1, 1]} : vector<9x8x4xf32> to vector<1x8x4xf32>
    %20 = vector.shape_cast %19 : vector<1x8x4xf32> to vector<8x4xf32>
    %cst_7 = arith.constant dense<0.000000e+00> : vector<8x256xf32>
    %21 = tpu.matmul %20, %18, %cst_7 {dimension_numbers = #tpu.dot_dimension_numbers<[1], [0], [0], [1], [0, 0, 1, 1], [], []>} : vector<8x4xf32>, vector<4x256xf32>, vector<8x256xf32> -> vector<8x256xf32>
    %22 = arith.addf %8, %21 : vector<8x256xf32>
    %c16_i32 = arith.constant 16 : i32
    %23 = tpu.dynamic_rotate %1 by %c16_i32 dim 1 : vector<4x256xf32>, i32 -> vector<4x256xf32>
    %c1_i32_8 = arith.constant 1 : i32
    %24 = vector.broadcast %c1_i32_8 : i32 to vector<1x256xi32>
    %25 = arith.cmpi sge, %7, %24 : vector<1x256xi32>
    %cst_9 = arith.constant 0.000000e+00 : f32
    %26 = vector.shape_cast %25 : vector<1x256xi1> to vector<1x256xi1>
    %27 = vector.broadcast %26 : vector<1x256xi1> to vector<4x256xi1>
    %28 = vector.broadcast %cst_9 : f32 to vector<4x256xf32>
    %29 = arith.select %27, %23, %28 : vector<4x256xi1>, vector<4x256xf32>
    %30 = vector.extract_strided_slice %2 {offsets = [1, 0, 0], sizes = [1, 8, 4], strides = [1, 1, 1]} : vector<9x8x4xf32> to vector<1x8x4xf32>
    %31 = vector.shape_cast %30 : vector<1x8x4xf32> to vector<8x4xf32>
    %cst_10 = arith.constant dense<0.000000e+00> : vector<8x256xf32>
    %32 = tpu.matmul %31, %29, %cst_10 {dimension_numbers = #tpu.dot_dimension_numbers<[1], [0], [0], [1], [0, 0, 1, 1], [], []>} : vector<8x4xf32>, vector<4x256xf32>, vector<8x256xf32> -> vector<8x256xf32>
    %33 = arith.addf %22, %32 : vector<8x256xf32>
    %c15_i32_11 = arith.constant 15 : i32
    %34 = tpu.dynamic_rotate %1 by %c15_i32_11 dim 1 : vector<4x256xf32>, i32 -> vector<4x256xf32>
    %c1_i32_12 = arith.constant 1 : i32
    %35 = vector.broadcast %c1_i32_12 : i32 to vector<1x256xi32>
    %36 = arith.cmpi sge, %7, %35 : vector<1x256xi32>
    %c15_i32_13 = arith.constant 15 : i32
    %37 = vector.broadcast %c15_i32_13 : i32 to vector<1x256xi32>
    %38 = arith.cmpi slt, %5, %37 : vector<1x256xi32>
    %39 = arith.andi %36, %38 : vector<1x256xi1>
    %cst_14 = arith.constant 0.000000e+00 : f32
    %40 = vector.shape_cast %39 : vector<1x256xi1> to vector<1x256xi1>
    %41 = vector.broadcast %40 : vector<1x256xi1> to vector<4x256xi1>
    %42 = vector.broadcast %cst_14 : f32 to vector<4x256xf32>
    %43 = arith.select %41, %34, %42 : vector<4x256xi1>, vector<4x256xf32>
    %44 = vector.extract_strided_slice %2 {offsets = [2, 0, 0], sizes = [1, 8, 4], strides = [1, 1, 1]} : vector<9x8x4xf32> to vector<1x8x4xf32>
    %45 = vector.shape_cast %44 : vector<1x8x4xf32> to vector<8x4xf32>
    %cst_15 = arith.constant dense<0.000000e+00> : vector<8x256xf32>
    %46 = tpu.matmul %45, %43, %cst_15 {dimension_numbers = #tpu.dot_dimension_numbers<[1], [0], [0], [1], [0, 0, 1, 1], [], []>} : vector<8x4xf32>, vector<4x256xf32>, vector<8x256xf32> -> vector<8x256xf32>
    %47 = arith.addf %33, %46 : vector<8x256xf32>
    %c1_i32_16 = arith.constant 1 : i32
    %48 = tpu.dynamic_rotate %1 by %c1_i32_16 dim 1 : vector<4x256xf32>, i32 -> vector<4x256xf32>
    %c1_i32_17 = arith.constant 1 : i32
    %49 = vector.broadcast %c1_i32_17 : i32 to vector<1x256xi32>
    %50 = arith.cmpi sge, %5, %49 : vector<1x256xi32>
    %cst_18 = arith.constant 0.000000e+00 : f32
    %51 = vector.shape_cast %50 : vector<1x256xi1> to vector<1x256xi1>
    %52 = vector.broadcast %51 : vector<1x256xi1> to vector<4x256xi1>
    %53 = vector.broadcast %cst_18 : f32 to vector<4x256xf32>
    %54 = arith.select %52, %48, %53 : vector<4x256xi1>, vector<4x256xf32>
    %55 = vector.extract_strided_slice %2 {offsets = [3, 0, 0], sizes = [1, 8, 4], strides = [1, 1, 1]} : vector<9x8x4xf32> to vector<1x8x4xf32>
    %56 = vector.shape_cast %55 : vector<1x8x4xf32> to vector<8x4xf32>
    %cst_19 = arith.constant dense<0.000000e+00> : vector<8x256xf32>
    %57 = tpu.matmul %56, %54, %cst_19 {dimension_numbers = #tpu.dot_dimension_numbers<[1], [0], [0], [1], [0, 0, 1, 1], [], []>} : vector<8x4xf32>, vector<4x256xf32>, vector<8x256xf32> -> vector<8x256xf32>
    %58 = arith.addf %47, %57 : vector<8x256xf32>
    %59 = vector.extract_strided_slice %2 {offsets = [4, 0, 0], sizes = [1, 8, 4], strides = [1, 1, 1]} : vector<9x8x4xf32> to vector<1x8x4xf32>
    %60 = vector.shape_cast %59 : vector<1x8x4xf32> to vector<8x4xf32>
    %cst_20 = arith.constant dense<0.000000e+00> : vector<8x256xf32>
    %61 = tpu.matmul %60, %1, %cst_20 {dimension_numbers = #tpu.dot_dimension_numbers<[1], [0], [0], [1], [0, 0, 1, 1], [], []>} : vector<8x4xf32>, vector<4x256xf32>, vector<8x256xf32> -> vector<8x256xf32>
    %62 = arith.addf %58, %61 : vector<8x256xf32>
    %c255_i32 = arith.constant 255 : i32
    %63 = tpu.dynamic_rotate %1 by %c255_i32 dim 1 : vector<4x256xf32>, i32 -> vector<4x256xf32>
    %c15_i32_21 = arith.constant 15 : i32
    %64 = vector.broadcast %c15_i32_21 : i32 to vector<1x256xi32>
    %65 = arith.cmpi slt, %5, %64 : vector<1x256xi32>
    %cst_22 = arith.constant 0.000000e+00 : f32
    %66 = vector.shape_cast %65 : vector<1x256xi1> to vector<1x256xi1>
    %67 = vector.broadcast %66 : vector<1x256xi1> to vector<4x256xi1>
    %68 = vector.broadcast %cst_22 : f32 to vector<4x256xf32>
    %69 = arith.select %67, %63, %68 : vector<4x256xi1>, vector<4x256xf32>
    %70 = vector.extract_strided_slice %2 {offsets = [5, 0, 0], sizes = [1, 8, 4], strides = [1, 1, 1]} : vector<9x8x4xf32> to vector<1x8x4xf32>
    %71 = vector.shape_cast %70 : vector<1x8x4xf32> to vector<8x4xf32>
    %cst_23 = arith.constant dense<0.000000e+00> : vector<8x256xf32>
    %72 = tpu.matmul %71, %69, %cst_23 {dimension_numbers = #tpu.dot_dimension_numbers<[1], [0], [0], [1], [0, 0, 1, 1], [], []>} : vector<8x4xf32>, vector<4x256xf32>, vector<8x256xf32> -> vector<8x256xf32>
    %73 = arith.addf %62, %72 : vector<8x256xf32>
    %c241_i32 = arith.constant 241 : i32
    %74 = tpu.dynamic_rotate %1 by %c241_i32 dim 1 : vector<4x256xf32>, i32 -> vector<4x256xf32>
    %c15_i32_24 = arith.constant 15 : i32
    %75 = vector.broadcast %c15_i32_24 : i32 to vector<1x256xi32>
    %76 = arith.cmpi slt, %7, %75 : vector<1x256xi32>
    %c1_i32_25 = arith.constant 1 : i32
    %77 = vector.broadcast %c1_i32_25 : i32 to vector<1x256xi32>
    %78 = arith.cmpi sge, %5, %77 : vector<1x256xi32>
    %79 = arith.andi %76, %78 : vector<1x256xi1>
    %cst_26 = arith.constant 0.000000e+00 : f32
    %80 = vector.shape_cast %79 : vector<1x256xi1> to vector<1x256xi1>
    %81 = vector.broadcast %80 : vector<1x256xi1> to vector<4x256xi1>
    %82 = vector.broadcast %cst_26 : f32 to vector<4x256xf32>
    %83 = arith.select %81, %74, %82 : vector<4x256xi1>, vector<4x256xf32>
    %84 = vector.extract_strided_slice %2 {offsets = [6, 0, 0], sizes = [1, 8, 4], strides = [1, 1, 1]} : vector<9x8x4xf32> to vector<1x8x4xf32>
    %85 = vector.shape_cast %84 : vector<1x8x4xf32> to vector<8x4xf32>
    %cst_27 = arith.constant dense<0.000000e+00> : vector<8x256xf32>
    %86 = tpu.matmul %85, %83, %cst_27 {dimension_numbers = #tpu.dot_dimension_numbers<[1], [0], [0], [1], [0, 0, 1, 1], [], []>} : vector<8x4xf32>, vector<4x256xf32>, vector<8x256xf32> -> vector<8x256xf32>
    %87 = arith.addf %73, %86 : vector<8x256xf32>
    %c240_i32 = arith.constant 240 : i32
    %88 = tpu.dynamic_rotate %1 by %c240_i32 dim 1 : vector<4x256xf32>, i32 -> vector<4x256xf32>
    %c15_i32_28 = arith.constant 15 : i32
    %89 = vector.broadcast %c15_i32_28 : i32 to vector<1x256xi32>
    %90 = arith.cmpi slt, %7, %89 : vector<1x256xi32>
    %cst_29 = arith.constant 0.000000e+00 : f32
    %91 = vector.shape_cast %90 : vector<1x256xi1> to vector<1x256xi1>
    %92 = vector.broadcast %91 : vector<1x256xi1> to vector<4x256xi1>
    %93 = vector.broadcast %cst_29 : f32 to vector<4x256xf32>
    %94 = arith.select %92, %88, %93 : vector<4x256xi1>, vector<4x256xf32>
    %95 = vector.extract_strided_slice %2 {offsets = [7, 0, 0], sizes = [1, 8, 4], strides = [1, 1, 1]} : vector<9x8x4xf32> to vector<1x8x4xf32>
    %96 = vector.shape_cast %95 : vector<1x8x4xf32> to vector<8x4xf32>
    %cst_30 = arith.constant dense<0.000000e+00> : vector<8x256xf32>
    %97 = tpu.matmul %96, %94, %cst_30 {dimension_numbers = #tpu.dot_dimension_numbers<[1], [0], [0], [1], [0, 0, 1, 1], [], []>} : vector<8x4xf32>, vector<4x256xf32>, vector<8x256xf32> -> vector<8x256xf32>
    %98 = arith.addf %87, %97 : vector<8x256xf32>
    %c239_i32 = arith.constant 239 : i32
    %99 = tpu.dynamic_rotate %1 by %c239_i32 dim 1 : vector<4x256xf32>, i32 -> vector<4x256xf32>
    %c15_i32_31 = arith.constant 15 : i32
    %100 = vector.broadcast %c15_i32_31 : i32 to vector<1x256xi32>
    %101 = arith.cmpi slt, %7, %100 : vector<1x256xi32>
    %c15_i32_32 = arith.constant 15 : i32
    %102 = vector.broadcast %c15_i32_32 : i32 to vector<1x256xi32>
    %103 = arith.cmpi slt, %5, %102 : vector<1x256xi32>
    %104 = arith.andi %101, %103 : vector<1x256xi1>
    %cst_33 = arith.constant 0.000000e+00 : f32
    %105 = vector.shape_cast %104 : vector<1x256xi1> to vector<1x256xi1>
    %106 = vector.broadcast %105 : vector<1x256xi1> to vector<4x256xi1>
    %107 = vector.broadcast %cst_33 : f32 to vector<4x256xf32>
    %108 = arith.select %106, %99, %107 : vector<4x256xi1>, vector<4x256xf32>
    %109 = vector.extract_strided_slice %2 {offsets = [8, 0, 0], sizes = [1, 8, 4], strides = [1, 1, 1]} : vector<9x8x4xf32> to vector<1x8x4xf32>
    %110 = vector.shape_cast %109 : vector<1x8x4xf32> to vector<8x4xf32>
    %cst_34 = arith.constant dense<0.000000e+00> : vector<8x256xf32>
    %111 = tpu.matmul %110, %108, %cst_34 {dimension_numbers = #tpu.dot_dimension_numbers<[1], [0], [0], [1], [0, 0, 1, 1], [], []>} : vector<8x4xf32>, vector<4x256xf32>, vector<8x256xf32> -> vector<8x256xf32>
    %112 = arith.addf %98, %111 : vector<8x256xf32>
    %c0_35 = arith.constant 0 : index
    %c0_36 = arith.constant 0 : index
    %c0_37 = arith.constant 0 : index
    %113 = vector.load %arg3[%c0_35, %c0_36, %c0_37] : memref<1x8x256xf32, #tpu.memory_space<vmem>>, vector<1x8x256xf32>
    %114 = vector.shape_cast %113 : vector<1x8x256xf32> to vector<8x256xf32>
    %115 = vector.shape_cast %112 : vector<8x256xf32> to vector<1x8x256xf32>
    tpu.vector_store %arg3[%c0_35, %c0_36, %c0_37], %115 {strides = array<i32>} : memref<1x8x256xf32, #tpu.memory_space<vmem>>, vector<1x8x256xf32>,
    %cst_38 = arith.constant dense<0.000000e+00> : vector<8xf32>
    %116 = vector.multi_reduction <add>, %112, %cst_38 [1] : vector<8x256xf32> to vector<8xf32>
    %117 = vector.shape_cast %116 : vector<8xf32> to vector<8x1xf32>
    %cst_39 = arith.constant 3.906250e-03 : f32
    %118 = vector.broadcast %cst_39 : f32 to vector<8x1xf32>
    %119 = arith.mulf %117, %118 : vector<8x1xf32>
    %120 = vector.broadcast %119 : vector<8x1xf32> to vector<8x256xf32>
    %121 = arith.subf %112, %120 : vector<8x256xf32>
    %122 = arith.mulf %121, %121 : vector<8x256xf32>
    %cst_40 = arith.constant dense<0.000000e+00> : vector<8xf32>
    %123 = vector.multi_reduction <add>, %122, %cst_40 [1] : vector<8x256xf32> to vector<8xf32>
    %124 = vector.shape_cast %123 : vector<8xf32> to vector<8x1xf32>
    %125 = tpu.concatenate %117, %124 in 1 : vector<8x1xf32>, vector<8x1xf32> -> vector<8x2xf32>
    %c0_41 = arith.constant 0 : index
    %c0_42 = arith.constant 0 : index
    %c0_43 = arith.constant 0 : index
    %126 = vector.load %arg4[%c0_41, %c0_42, %c0_43] : memref<1x8x2xf32, #tpu.memory_space<vmem>>, vector<1x8x2xf32>
    %127 = vector.shape_cast %126 : vector<1x8x2xf32> to vector<8x2xf32>
    %128 = vector.shape_cast %125 : vector<8x2xf32> to vector<1x8x2xf32>
    tpu.vector_store %arg4[%c0_41, %c0_42, %c0_43], %128 {strides = array<i32>} : memref<1x8x2xf32, #tpu.memory_space<vmem>>, vector<1x8x2xf32>,
    return
  }
  func.func @transform_0(%arg0: i32) -> (i32, i32, i32) {
    %c0_i32 = arith.constant 0 : i32
    %c0_i32_0 = arith.constant 0 : i32
    %c0_i32_1 = arith.constant 0 : i32
    return %arg0, %c0_i32, %c0_i32_0 : i32, i32, i32
  }
  func.func @transform_1(%arg0: i32) -> (i32, i32, i32) {
    %c0_i32 = arith.constant 0 : i32
    %c0_i32_0 = arith.constant 0 : i32
    %c0_i32_1 = arith.constant 0 : i32
    %c0_i32_2 = arith.constant 0 : i32
    return %c0_i32, %c0_i32_0, %c0_i32_1 : i32, i32, i32
  }
  func.func @transform_2(%arg0: i32) -> (i32, i32, i32) {
    %c0_i32 = arith.constant 0 : i32
    %c0_i32_0 = arith.constant 0 : i32
    %c0_i32_1 = arith.constant 0 : i32
    return %arg0, %c0_i32, %c0_i32_0 : i32, i32, i32
  }
  func.func @transform_3(%arg0: i32) -> (i32, i32, i32) {
    %c0_i32 = arith.constant 0 : i32
    %c0_i32_0 = arith.constant 0 : i32
    %c0_i32_1 = arith.constant 0 : i32
    return %arg0, %c0_i32, %c0_i32_0 : i32, i32, i32
  }
}

</mosaic_0001>

<llo_original>
// kernel: tpu_custom_call.1
$region0: #{tpu_custom_call.1}
  #allocation0 [shape = 'u32[]', space=smem, size = 0x4, offset = 0x4, fixed_abs, tag = 'smem constant byte address 0x4 - core index']
  #allocation1 [shape = 'u32[144,128]{1,0:T(1,128)}', space=vmem, size = 0x12000, scoped, tag = 'internal scratch']
  %s0 = inlined_call_operand.vmem [shape: f32[2,4,256], index: 0, kind: input, shape index: {}]
  %s1 = inlined_call_operand.vmem [shape: f32[9,8,4], index: 1, kind: input, shape index: {}]
  %s2 = inlined_call_operand.hbm [shape: f32[2,8,256], index: 2, kind: output, shape index: {0}]
  %s3 = inlined_call_operand.vmem [shape: f32[2,8,2], index: 3, kind: output, shape index: {1}]
  %4 = xla_tuple %s2, %s3
  %s5 = sld [smem:[#allocation0]]
  $region49: #{tpu_custom_call.1} parent=0
    _
  %s7 = ssub.s32 1, %s5
  %s8 = scalar_select 0, %s7, %s5
  $region1: #{tpu_custom_call.1} parent=0
    #allocation2 [shape = 'u8[16384]{0}', space=vmem, size = 0x4000, scoped, tag = 'output window, operand 0']
    #allocation3 [shape = 's32[2]{0}', space=sflag, size = 0x8, scoped, tag = 'scoped memory for tpu_custom_call.1']
    %9 = vsyncpa [#allocation3], 0
    %s10 = scalar_lea.sflag [#allocation3], 1
    %11 = vsyncpa %s10, 0
    loop: start=0, step=1, limit=4
    $region2: #{tpu_custom_call.1} parent=1 // loop_pre_header
      _
    $region3: #{tpu_custom_call.1} parent=1 // loop_header
      %s13 = sphi 0, %s17
      %p14 = scmp.ge.s32.totalorder %s13, 4
      %s23 = sphi 0, %s25
      %s26 = sphi 0, %s23
      %s27 = sphi 0, %s26
      %s43 = sphi 0, %s27
      %s47 = sphi 0, %s47
      %s49 = sphi 0, %s47
      %s50 = sphi 0, %s49
      %s64 = sphi 0, %s50
      %s70 = sphi 0, %s72
      %s73 = sphi 0, %s70
      %s74 = sphi 0, %s73
      %s90 = sphi 0, %s74
      %s96 = sphi 0, %s98
      %s99 = sphi 0, %s96
      %s100 = sphi 0, %s99
      %s116 = sphi 0, %s100
    $region4: #{tpu_custom_call.1} parent=1 // loop_header_branch
      %16 = sbr.rel (%p14) target = $region8
    $region5: #{tpu_custom_call.1} parent=1 // loop_body
      %s18 = ssub.s32 %s13, 1
      %s19 = ssub.s32 %s13, 2
      %s20 = sadd.s32 %s13, 1
      %s21 = ssub.s32 %s13, %s20
      %p22 = scmp.eq.s32.totalorder %s21, 0
      %s24 = sadd.s32 %s23, 1
      %s25 = scalar_select %p22, %s23, %s24
      %p28 = pneg %p22
      %p29 = scmp.eq.s32.totalorder %s13, 1
      %p30 = por %p28, %p29
      %p31 = scmp.ne.s32.totalorder %s23, %s26
      %p32 = scmp.eq.s32.totalorder %s13, 0
      %p33 = por %p31, %p32
      %p34 = scmp.ne.s32.totalorder %s23, %s26
      %p35 = scmp.eq.s32.totalorder %s18, 1
      %p36 = por %p34, %p35
      %p37 = scmp.ne.s32.totalorder %s26, %s27
      %p38 = scmp.eq.s32.totalorder %s18, 0
      %p39 = por %p37, %p38
      %p40 = scmp.ne.s32.totalorder %s26, %s27
      %p41 = scmp.eq.s32.totalorder %s19, 1
      %p42 = por %p40, %p41
      %p44 = scmp.ne.s32.totalorder %s27, %s43
      %p45 = scmp.eq.s32.totalorder %s19, 0
      %p46 = por %p44, %p45
      %s48 = sadd.s32 %s47, 1
      %p51 = scmp.eq.s32.totalorder %s13, 1
      %p52 = scmp.ne.s32.totalorder %s47, %s49
      %p53 = scmp.eq.s32.totalorder %s13, 0
      %p54 = por %p52, %p53
      %p55 = scmp.ne.s32.totalorder %s47, %s49
      %p56 = scmp.eq.s32.totalorder %s18, 1
      %p57 = por %p55, %p56
      %p58 = scmp.ne.s32.totalorder %s49, %s50
      %p59 = scmp.eq.s32.totalorder %s18, 0
      %p60 = por %p58, %p59
      %p61 = scmp.ne.s32.totalorder %s49, %s50
      %p62 = scmp.eq.s32.totalorder %s19, 1
      %p63 = por %p61, %p62
      %p65 = scmp.ne.s32.totalorder %s50, %s64
      %p66 = scmp.eq.s32.totalorder %s19, 0
      %p67 = por %p65, %p66
      %s68 = ssub.s32 %s13, %s20
      %p69 = scmp.eq.s32.totalorder %s68, 0
      %s71 = sadd.s32 %s70, 1
      %s72 = scalar_select %p69, %s70, %s71
      %p75 = pneg %p69
      %p76 = scmp.eq.s32.totalorder %s13, 1
      %p77 = por %p75, %p76
      %p78 = scmp.ne.s32.totalorder %s70, %s73
      %p79 = scmp.eq.s32.totalorder %s13, 0
      %p80 = por %p78, %p79
      %p81 = scmp.ne.s32.totalorder %s70, %s73
      %p82 = scmp.eq.s32.totalorder %s18, 1
      %p83 = por %p81, %p82
      %p84 = scmp.ne.s32.totalorder %s73, %s74
      %p85 = scmp.eq.s32.totalorder %s18, 0
      %p86 = por %p84, %p85
      %p87 = scmp.ne.s32.totalorder %s73, %s74
      %p88 = scmp.eq.s32.totalorder %s19, 1
      %p89 = por %p87, %p88
      %p91 = scmp.ne.s32.totalorder %s74, %s90
      %p92 = scmp.eq.s32.totalorder %s19, 0
      %p93 = por %p91, %p92
      %s94 = ssub.s32 %s13, %s20
      %p95 = scmp.eq.s32.totalorder %s94, 0
      %s97 = sadd.s32 %s96, 1
      %s98 = scalar_select %p95, %s96, %s97
      %p101 = pneg %p95
      %p102 = scmp.eq.s32.totalorder %s13, 1
      %p103 = por %p101, %p102
      %p104 = scmp.ne.s32.totalorder %s96, %s99
      %p105 = scmp.eq.s32.totalorder %s13, 0
      %p106 = por %p104, %p105
      %p107 = scmp.ne.s32.totalorder %s96, %s99
      %p108 = scmp.eq.s32.totalorder %s18, 1
      %p109 = por %p107, %p108
      %p110 = scmp.ne.s32.totalorder %s99, %s100
      %p111 = scmp.eq.s32.totalorder %s18, 0
      %p112 = por %p110, %p111
      %p113 = scmp.ne.s32.totalorder %s99, %s100
      %p114 = scmp.eq.s32.totalorder %s19, 1
      %p115 = por %p113, %p114
      %p117 = scmp.ne.s32.totalorder %s100, %s116
      %p118 = scmp.eq.s32.totalorder %s19, 0
      %p119 = por %p117, %p118
      %p120 = scmp.le.s32.totalorder 1, %s13
      %p121 = scmp.lt.s32.totalorder %s13, 3
      %p122 = pnand %p120, %p121
      %p123 = pneg %p122
      // Predicated region
      $region9: #{tpu_custom_call.1} parent=5 // pred_check
        _
      $region10: #{tpu_custom_call.1} parent=5 // pred_check_branch
        %125 = sbr.rel (%p122) target = $region12
      $region11: #{tpu_custom_call.1} parent=5 // pred_region
        %s126 = ssub.s32 %s13, 1
        // Predicated region
        $region13: #{tpu_custom_call.1} parent=11 // pred_check
          %p127 = pneg %p60
        $region14: #{tpu_custom_call.1} parent=11 // pred_check_branch
          %129 = sbr.rel (%p127) target = $region16
        $region15: #{tpu_custom_call.1} parent=11 // pred_region
          _
        $region16: #{tpu_custom_call.1} parent=11 // pred_fallthru
          _
      $region12: #{tpu_custom_call.1} parent=5 // pred_fallthru
        _
      %p130 = scmp.lt.s32.totalorder %s13, 2
      // Predicated region
      $region17: #{tpu_custom_call.1} parent=5 // pred_check
        %p131 = pneg %p130
      $region18: #{tpu_custom_call.1} parent=5 // pred_check_branch
        %133 = sbr.rel (%p131) target = $region20
      $region19: #{tpu_custom_call.1} parent=5 // pred_region
        // Predicated region
        $region21: #{tpu_custom_call.1} parent=19 // pred_check
          %p134 = pneg %p33
        $region22: #{tpu_custom_call.1} parent=19 // pred_check_branch
          %136 = sbr.rel (%p134) target = $region24
        $region23: #{tpu_custom_call.1} parent=19 // pred_region
          %p137 = scmp.lt.s32.totalorder %s13, 1
          %s138 = scalar_select %p137, %s13, 1
          %s139 = smul.addr %s138, 2
          %s140 = smul.addr %s139, 4
          %s141 = scalar_lea.vmem %s0, %s140
        $region24: #{tpu_custom_call.1} parent=19 // pred_fallthru
          _
      $region20: #{tpu_custom_call.1} parent=5 // pred_fallthru
        _
      %p142 = scmp.le.s32.totalorder 1, %s13
      %p143 = scmp.lt.s32.totalorder %s13, 3
      %p144 = pnand %p142, %p143
      %p145 = pneg %p144
      // Predicated region
      $region25: #{tpu_custom_call.1} parent=5 // pred_check
        _
      $region26: #{tpu_custom_call.1} parent=5 // pred_check_branch
        %147 = sbr.rel (%p144) target = $region28
      $region27: #{tpu_custom_call.1} parent=5 // pred_region
        %s148 = ssub.s32 %s13, 1
        %p149 = scmp.lt.s32.totalorder %s18, 1
        %s150 = scalar_select %p149, %s18, 1
        %s151 = smul.addr %s150, 2
        %s152 = smul.addr %s151, 4
        %s153 = scalar_lea.vmem %s0, %s152
        %p154 = pneg %p39
        %p155 = pneg %p36
        %p156 = pneg %p60
        %p157 = pneg %p57
        %p158 = pneg %p86
        %p159 = pneg %p83
        %s160 = sand.u32 %s73, 1
        %s161 = scalar_lea.sflag [#allocation3], %s160
        %s162 = sand.u32 %s73, 1
        %s163 = smul.addr %s162, 16
        %s164 = scalar_lea.vmem [#allocation2], %s163
        %p165 = pneg %p112
        %p166 = pneg %p109
        %p167 = scmp.lt.s32.totalorder %s18, 1
        %s168 = scalar_select %p167, %s18, 1
        %s169 = smul.addr %s168, 8
        %s170 = scalar_lea.vmem %s3, %s169
        %p171 = scmp.lt.s32.totalorder %s18, 1
        %s172 = scalar_select %p171, %s18, 1
        %s173 = smul.addr %s172, 2
        %s174 = smul.addr %s173, 4
        %s175 = scalar_lea.vmem %s0, %s174
        %p176 = scmp.lt.s32.totalorder %s18, 1
        %s177 = scalar_select %p176, %s18, 1
        %s178 = smul.addr %s177, 8
        %s179 = scalar_lea.vmem %s3, %s178
        %v180 = vld [vmem:[%s175] sm:$0xff]
        %v181 = vld [vmem:[%s1] sm:$0xff]
        %v182 = vld [vmem:[%s1 + $0x8] sm:$0xff]
        %v183 = vld [vmem:[%s1 + $0x10] sm:$0xff]
        %v184 = vld [vmem:[%s1 + $0x18] sm:$0xff]
        %v185 = vld [vmem:[%s1 + $0x20] sm:$0xff]
        %v186 = vld [vmem:[%s1 + $0x28] sm:$0xff]
        %v187 = vld [vmem:[%s1 + $0x30] sm:$0xff]
        %v188 = vld [vmem:[%s1 + $0x38] sm:$0xff]
        %v189 = vld [vmem:[%s1 + $0x40] sm:$0xff]
        %v190 = vlaneseq
        %v191 = vand.u32 %v190, 127
        %v192 = vadd.s32 %v191, 128
        %v193 = vand.u32 %v191, 15
        %v194 = vand.u32 %v192, 15
        %v195 = vshra.s32 %v191, 4
        %v196 = vshra.s32 %v192, 4
        %v198 = vcombine.high %v180, %v180
        %200 = vrot.lane.b32.xlu0 %v180, 17
        %v201 = vpop.permute.xlu0 %200
        %202 = vrot.lane.b32.xlu0 %v198, 17
        %v203 = vpop.permute.xlu0 %202
        %vm204 = vcmp.lt.s32.totalorder %v191, 17
        %v205 = vsel %vm204, %v201, %v203
        %v206 = vsel %vm204, %v203, %v201
        %vm207 = vcmp.ge.s32.totalorder %v195, 1
        %vm208 = vcmp.ge.s32.totalorder %v196, 1
        %vm209 = vcmp.ge.s32.totalorder %v193, 1
        %vm210 = vcmp.ge.s32.totalorder %v194, 1
        %vm211 = vmand %vm207, %vm209
        %vm212 = vmand %vm208, %vm210
        %v213 = vsel %vm211, 1, 0
        %v214 = vsel %vm212, 1, 0
        %vm215 = vcmp.eq.s32.totalorder %v213, 1
        %vm216 = vcmp.eq.s32.totalorder %v214, 1
        %v217 = vsel %vm215, %v206, 0.0
        %v218 = vsel %vm216, %v205, 0.0
        %219 = vrot.lane.b32.xlu0 %v180, 16
        %v220 = vpop.permute.xlu0 %219
        %221 = vrot.lane.b32.xlu0 %v198, 16
        %v222 = vpop.permute.xlu0 %221
        %vm223 = vcmp.lt.s32.totalorder %v191, 16
        %v224 = vsel %vm223, %v220, %v222
        %v225 = vsel %vm223, %v222, %v220
        %v226 = vsel %vm207, 1, 0
        %v227 = vsel %vm208, 1, 0
        %vm228 = vcmp.eq.s32.totalorder %v226, 1
        %vm229 = vcmp.eq.s32.totalorder %v227, 1
        %v230 = vsel %vm228, %v225, 0.0
        %v231 = vsel %vm229, %v224, 0.0
        %vm232 = vcmask 31744
        %v234 = vsel %vm232, %v182, 0
        %vm236 = vcmask 1043456
        %v238 = vsel %vm236, %v230, 0
        %v241 = vsel %vm236, %v231, 0
        %243 = vmatprep.subr.mxu0 %v241
        %244 = vmatpush1.msra.mxu0 %v238
        %245 = vmatprep.subr.mxu0 0.0
        %246 = vmatpush1.msra.mxu0 0.0
        %247 = vmatprep.subr.mxu0 0.0
        %248 = vmatpush1.msra.mxu0 0.0
        %249 = vmatprep.subr.mxu0 0.0
        %250 = vmatpush1.msra.mxu0 0.0
        %251 = vmatprep.subr.mxu0 0.0
        %252 = vmatpush1.msra.mxu0 0.0
        %253 = vmatprep.subr.mxu0 0.0
        %254 = vmatpush1.msra.mxu0 0.0
        %255 = vmatprep.subr.mxu0 0.0
        %256 = vmatpush1.msra.mxu0 0.0
        %257 = vmatprep.subr.mxu0 0.0
        %258 = vmatpush1.msra.mxu0 0.0
        %259 = vmatprep.subr.mxu0 0.0
        %260 = vmatpush1.msra.mxu0 0.0
        %261 = vmatprep.subr.mxu0 0.0
        %262 = vmatpush1.msra.mxu0 0.0
        %263 = vmatprep.subr.mxu0 0.0
        %264 = vmatpush1.msra.mxu0 0.0
        %265 = vmatprep.subr.mxu0 0.0
        %266 = vmatpush1.msra.mxu0 0.0
        %267 = vmatprep.subr.mxu0 0.0
        %268 = vmatpush1.msra.mxu0 0.0
        %269 = vmatprep.subr.mxu0 0.0
        %270 = vmatpush1.msra.mxu0 0.0
        %271 = vmatprep.subr.mxu0 0.0
        %272 = vmatpush1.msra.mxu0 0.0
        %273 = vmatprep.subr.mxu0 0.0
        %274 = vmatpush1.msra.mxu0 0.0
        %275 = vmatprep.subr.mxu0 0.0
        %276 = vmatpush1.msra.mxu0 0.0
        %277 = vmatprep.subr.mxu0 0.0
        %278 = vmatpush1.msra.mxu0 0.0
        %279 = vmatprep.subr.mxu0 0.0
        %280 = vmatpush1.msra.mxu0 0.0
        %281 = vmatprep.subr.mxu0 0.0
        %282 = vmatpush1.msra.mxu0 0.0
        %283 = vmatprep.subr.mxu0 0.0
        %284 = vmatpush1.msra.mxu0 0.0
        %285 = vmatprep.subr.mxu0 0.0
        %286 = vmatpush1.msra.mxu0 0.0
        %287 = vmatprep.subr.mxu0 0.0
        %288 = vmatpush1.msra.mxu0 0.0
        %289 = vmatprep.subr.mxu0 0.0
        %290 = vmatpush1.msra.mxu0 0.0
        %291 = vmatprep.subr.mxu0 0.0
        %292 = vmatpush1.msra.mxu0 0.0
        %293 = vmatprep.subr.mxu0 0.0
        %294 = vmatpush1.msra.mxu0 0.0
        %295 = vmatprep.subr.mxu0 0.0
        %296 = vmatpush1.msra.mxu0 0.0
        %297 = vmatprep.subr.mxu0 0.0
        %298 = vmatpush1.msra.mxu0 0.0
        %299 = vmatprep.subr.mxu0 0.0
        %300 = vmatpush1.msra.mxu0 0.0
        %301 = vmatprep.subr.mxu0 0.0
        %302 = vmatpush1.msra.mxu0 0.0
        %303 = vmatprep.subr.mxu0 0.0
        %304 = vmatpush1.msra.mxu0 0.0
        %305 = vmatprep.subr.mxu0 0.0
        %306 = vmatpush1.msra.mxu0 0.0
        %307 = vmatprep.mubr.f32.mxu0 0.0
        %308 = vmatmul.mubr.f32.gmra.mrb[0].mxu0 %v234
        %v309 = vpop.f32.mrb[0].mxu0
        %v310 = vadd.f32 0.0, %v309
        %v311 = vpop.f32.mrb[0].mxu0
        %v312 = vadd.f32 0.0, %v311
        %313 = vdwg.mxu0
        %v315 = vsel %vm232, %v181, 0
        %v318 = vsel %vm236, %v217, 0
        %v321 = vsel %vm236, %v218, 0
        %323 = vmatprep.subr.mxu0 %v321
        %324 = vmatpush1.msra.mxu0 %v318
        %325 = vmatprep.subr.mxu0 0.0
        %326 = vmatpush1.msra.mxu0 0.0
        %327 = vmatprep.subr.mxu0 0.0
        %328 = vmatpush1.msra.mxu0 0.0
        %329 = vmatprep.subr.mxu0 0.0
        %330 = vmatpush1.msra.mxu0 0.0
        %331 = vmatprep.subr.mxu0 0.0
        %332 = vmatpush1.msra.mxu0 0.0
        %333 = vmatprep.subr.mxu0 0.0
        %334 = vmatpush1.msra.mxu0 0.0
        %335 = vmatprep.subr.mxu0 0.0
        %336 = vmatpush1.msra.mxu0 0.0
        %337 = vmatprep.subr.mxu0 0.0
        %338 = vmatpush1.msra.mxu0 0.0
        %339 = vmatprep.subr.mxu0 0.0
        %340 = vmatpush1.msra.mxu0 0.0
        %341 = vmatprep.subr.mxu0 0.0
        %342 = vmatpush1.msra.mxu0 0.0
        %343 = vmatprep.subr.mxu0 0.0
        %344 = vmatpush1.msra.mxu0 0.0
        %345 = vmatprep.subr.mxu0 0.0
        %346 = vmatpush1.msra.mxu0 0.0
        %347 = vmatprep.subr.mxu0 0.0
        %348 = vmatpush1.msra.mxu0 0.0
        %349 = vmatprep.subr.mxu0 0.0
        %350 = vmatpush1.msra.mxu0 0.0
        %351 = vmatprep.subr.mxu0 0.0
        %352 = vmatpush1.msra.mxu0 0.0
        %353 = vmatprep.subr.mxu0 0.0
        %354 = vmatpush1.msra.mxu0 0.0
        %355 = vmatprep.subr.mxu0 0.0
        %356 = vmatpush1.msra.mxu0 0.0
        %357 = vmatprep.subr.mxu0 0.0
        %358 = vmatpush1.msra.mxu0 0.0
        %359 = vmatprep.subr.mxu0 0.0
        %360 = vmatpush1.msra.mxu0 0.0
        %361 = vmatprep.subr.mxu0 0.0
        %362 = vmatpush1.msra.mxu0 0.0
        %363 = vmatprep.subr.mxu0 0.0
        %364 = vmatpush1.msra.mxu0 0.0
        %365 = vmatprep.subr.mxu0 0.0
        %366 = vmatpush1.msra.mxu0 0.0
        %367 = vmatprep.subr.mxu0 0.0
        %368 = vmatpush1.msra.mxu0 0.0
        %369 = vmatprep.subr.mxu0 0.0
        %370 = vmatpush1.msra.mxu0 0.0
        %371 = vmatprep.subr.mxu0 0.0
        %372 = vmatpush1.msra.mxu0 0.0
        %373 = vmatprep.subr.mxu0 0.0
        %374 = vmatpush1.msra.mxu0 0.0
        %375 = vmatprep.subr.mxu0 0.0
        %376 = vmatpush1.msra.mxu0 0.0
        %377 = vmatprep.subr.mxu0 0.0
        %378 = vmatpush1.msra.mxu0 0.0
        %379 = vmatprep.subr.mxu0 0.0
        %380 = vmatpush1.msra.mxu0 0.0
        %381 = vmatprep.subr.mxu0 0.0
        %382 = vmatpush1.msra.mxu0 0.0
        %383 = vmatprep.subr.mxu0 0.0
        %384 = vmatpush1.msra.mxu0 0.0
        %385 = vmatprep.subr.mxu0 0.0
        %386 = vmatpush1.msra.mxu0 0.0
        %387 = vmatprep.mubr.f32.mxu0 0.0
        %388 = vmatmul.mubr.f32.gmra.mrb[0].mxu0 %v315
        %v389 = vpop.f32.mrb[0].mxu0
        %v390 = vadd.f32 %v310, %v389
        %v391 = vpop.f32.mrb[0].mxu0
        %v392 = vadd.f32 %v312, %v391
        %393 = vdwg.mxu0
        %394 = vrot.lane.b32.xlu0 %v180, 15
        %v395 = vpop.permute.xlu0 %394
        %396 = vrot.lane.b32.xlu0 %v198, 15
        %v397 = vpop.permute.xlu0 %396
        %vm398 = vcmp.lt.s32.totalorder %v191, 15
        %v399 = vsel %vm398, %v395, %v397
        %v400 = vsel %vm398, %v397, %v395
        %vm401 = vcmp.lt.s32.totalorder %v193, 15
        %vm402 = vcmp.lt.s32.totalorder %v194, 15
        %vm403 = vmand %vm207, %vm401
        %vm404 = vmand %vm208, %vm402
        %v405 = vsel %vm403, 1, 0
        %v406 = vsel %vm404, 1, 0
        %vm407 = vcmp.eq.s32.totalorder %v405, 1
        %vm408 = vcmp.eq.s32.totalorder %v406, 1
        %v409 = vsel %vm407, %v400, 0.0
        %v410 = vsel %vm408, %v399, 0.0
        %v412 = vsel %vm232, %v183, 0
        %v415 = vsel %vm236, %v409, 0
        %v418 = vsel %vm236, %v410, 0
        %420 = vmatprep.subr.mxu0 %v418
        %421 = vmatpush1.msra.mxu0 %v415
        %422 = vmatprep.subr.mxu0 0.0
        %423 = vmatpush1.msra.mxu0 0.0
        %424 = vmatprep.subr.mxu0 0.0
        %425 = vmatpush1.msra.mxu0 0.0
        %426 = vmatprep.subr.mxu0 0.0
        %427 = vmatpush1.msra.mxu0 0.0
        %428 = vmatprep.subr.mxu0 0.0
        %429 = vmatpush1.msra.mxu0 0.0
        %430 = vmatprep.subr.mxu0 0.0
        %431 = vmatpush1.msra.mxu0 0.0
        %432 = vmatprep.subr.mxu0 0.0
        %433 = vmatpush1.msra.mxu0 0.0
        %434 = vmatprep.subr.mxu0 0.0
        %435 = vmatpush1.msra.mxu0 0.0
        %436 = vmatprep.subr.mxu0 0.0
        %437 = vmatpush1.msra.mxu0 0.0
        %438 = vmatprep.subr.mxu0 0.0
        %439 = vmatpush1.msra.mxu0 0.0
        %440 = vmatprep.subr.mxu0 0.0
        %441 = vmatpush1.msra.mxu0 0.0
        %442 = vmatprep.subr.mxu0 0.0
        %443 = vmatpush1.msra.mxu0 0.0
        %444 = vmatprep.subr.mxu0 0.0
        %445 = vmatpush1.msra.mxu0 0.0
        %446 = vmatprep.subr.mxu0 0.0
        %447 = vmatpush1.msra.mxu0 0.0
        %448 = vmatprep.subr.mxu0 0.0
        %449 = vmatpush1.msra.mxu0 0.0
        %450 = vmatprep.subr.mxu0 0.0
        %451 = vmatpush1.msra.mxu0 0.0
        %452 = vmatprep.subr.mxu0 0.0
        %453 = vmatpush1.msra.mxu0 0.0
        %454 = vmatprep.subr.mxu0 0.0
        %455 = vmatpush1.msra.mxu0 0.0
        %456 = vmatprep.subr.mxu0 0.0
        %457 = vmatpush1.msra.mxu0 0.0
        %458 = vmatprep.subr.mxu0 0.0
        %459 = vmatpush1.msra.mxu0 0.0
        %460 = vmatprep.subr.mxu0 0.0
        %461 = vmatpush1.msra.mxu0 0.0
        %462 = vmatprep.subr.mxu0 0.0
        %463 = vmatpush1.msra.mxu0 0.0
        %464 = vmatprep.subr.mxu0 0.0
        %465 = vmatpush1.msra.mxu0 0.0
        %466 = vmatprep.subr.mxu0 0.0
        %467 = vmatpush1.msra.mxu0 0.0
        %468 = vmatprep.subr.mxu0 0.0
        %469 = vmatpush1.msra.mxu0 0.0
        %470 = vmatprep.subr.mxu0 0.0
        %471 = vmatpush1.msra.mxu0 0.0
        %472 = vmatprep.subr.mxu0 0.0
        %473 = vmatpush1.msra.mxu0 0.0
        %474 = vmatprep.subr.mxu0 0.0
        %475 = vmatpush1.msra.mxu0 0.0
        %476 = vmatprep.subr.mxu0 0.0
        %477 = vmatpush1.msra.mxu0 0.0
        %478 = vmatprep.subr.mxu0 0.0
        %479 = vmatpush1.msra.mxu0 0.0
        %480 = vmatprep.subr.mxu0 0.0
        %481 = vmatpush1.msra.mxu0 0.0
        %482 = vmatprep.subr.mxu0 0.0
        %483 = vmatpush1.msra.mxu0 0.0
        %484 = vmatprep.mubr.f32.mxu0 0.0
        %485 = vmatmul.mubr.f32.gmra.mrb[0].mxu0 %v412
        %v486 = vpop.f32.mrb[0].mxu0
        %v487 = vadd.f32 0.0, %v486
        %v488 = vpop.f32.mrb[0].mxu0
        %v489 = vadd.f32 0.0, %v488
        %490 = vdwg.mxu0
        %v491 = vadd.f32 %v390, %v487
        %v492 = vadd.f32 %v392, %v489
        %493 = vrot.lane.b32.xlu0 %v180, 1
        %v494 = vpop.permute.xlu0 %493
        %495 = vrot.lane.b32.xlu0 %v198, 1
        %v496 = vpop.permute.xlu0 %495
        %vm497 = vcmp.lt.s32.totalorder %v191, 1
        %v498 = vsel %vm497, %v494, %v496
        %v499 = vsel %vm497, %v496, %v494
        %v500 = vsel %vm209, 1, 0
        %v501 = vsel %vm210, 1, 0
        %vm502 = vcmp.eq.s32.totalorder %v500, 1
        %vm503 = vcmp.eq.s32.totalorder %v501, 1
        %v504 = vsel %vm502, %v499, 0.0
        %v505 = vsel %vm503, %v498, 0.0
        %v507 = vsel %vm232, %v184, 0
        %v510 = vsel %vm236, %v504, 0
        %v513 = vsel %vm236, %v505, 0
        %515 = vmatprep.subr.mxu0 %v513
        %516 = vmatpush1.msra.mxu0 %v510
        %517 = vmatprep.subr.mxu0 0.0
        %518 = vmatpush1.msra.mxu0 0.0
        %519 = vmatprep.subr.mxu0 0.0
        %520 = vmatpush1.msra.mxu0 0.0
        %521 = vmatprep.subr.mxu0 0.0
        %522 = vmatpush1.msra.mxu0 0.0
        %523 = vmatprep.subr.mxu0 0.0
        %524 = vmatpush1.msra.mxu0 0.0
        %525 = vmatprep.subr.mxu0 0.0
        %526 = vmatpush1.msra.mxu0 0.0
        %527 = vmatprep.subr.mxu0 0.0
        %528 = vmatpush1.msra.mxu0 0.0
        %529 = vmatprep.subr.mxu0 0.0
        %530 = vmatpush1.msra.mxu0 0.0
        %531 = vmatprep.subr.mxu0 0.0
        %532 = vmatpush1.msra.mxu0 0.0
        %533 = vmatprep.subr.mxu0 0.0
        %534 = vmatpush1.msra.mxu0 0.0
        %535 = vmatprep.subr.mxu0 0.0
        %536 = vmatpush1.msra.mxu0 0.0
        %537 = vmatprep.subr.mxu0 0.0
        %538 = vmatpush1.msra.mxu0 0.0
        %539 = vmatprep.subr.mxu0 0.0
        %540 = vmatpush1.msra.mxu0 0.0
        %541 = vmatprep.subr.mxu0 0.0
        %542 = vmatpush1.msra.mxu0 0.0
        %543 = vmatprep.subr.mxu0 0.0
        %544 = vmatpush1.msra.mxu0 0.0
        %545 = vmatprep.subr.mxu0 0.0
        %546 = vmatpush1.msra.mxu0 0.0
        %547 = vmatprep.subr.mxu0 0.0
        %548 = vmatpush1.msra.mxu0 0.0
        %549 = vmatprep.subr.mxu0 0.0
        %550 = vmatpush1.msra.mxu0 0.0
        %551 = vmatprep.subr.mxu0 0.0
        %552 = vmatpush1.msra.mxu0 0.0
        %553 = vmatprep.subr.mxu0 0.0
        %554 = vmatpush1.msra.mxu0 0.0
        %555 = vmatprep.subr.mxu0 0.0
        %556 = vmatpush1.msra.mxu0 0.0
        %557 = vmatprep.subr.mxu0 0.0
        %558 = vmatpush1.msra.mxu0 0.0
        %559 = vmatprep.subr.mxu0 0.0
        %560 = vmatpush1.msra.mxu0 0.0
        %561 = vmatprep.subr.mxu0 0.0
        %562 = vmatpush1.msra.mxu0 0.0
        %563 = vmatprep.subr.mxu0 0.0
        %564 = vmatpush1.msra.mxu0 0.0
        %565 = vmatprep.subr.mxu0 0.0
        %566 = vmatpush1.msra.mxu0 0.0
        %567 = vmatprep.subr.mxu0 0.0
        %568 = vmatpush1.msra.mxu0 0.0
        %569 = vmatprep.subr.mxu0 0.0
        %570 = vmatpush1.msra.mxu0 0.0
        %571 = vmatprep.subr.mxu0 0.0
        %572 = vmatpush1.msra.mxu0 0.0
        %573 = vmatprep.subr.mxu0 0.0
        %574 = vmatpush1.msra.mxu0 0.0
        %575 = vmatprep.subr.mxu0 0.0
        %576 = vmatpush1.msra.mxu0 0.0
        %577 = vmatprep.subr.mxu0 0.0
        %578 = vmatpush1.msra.mxu0 0.0
        %579 = vmatprep.mubr.f32.mxu0 0.0
        %580 = vmatmul.mubr.f32.gmra.mrb[0].mxu0 %v507
        %v581 = vpop.f32.mrb[0].mxu0
        %v582 = vadd.f32 0.0, %v581
        %v583 = vpop.f32.mrb[0].mxu0
        %v584 = vadd.f32 0.0, %v583
        %585 = vdwg.mxu0
        %v586 = vadd.f32 %v491, %v582
        %v587 = vadd.f32 %v492, %v584
        %v589 = vsel %vm232, %v185, 0
        %v591 = vsel %vm236, %v180, 0
        %v593 = vsel %vm236, %v198, 0
        %595 = vmatprep.subr.mxu0 %v593
        %596 = vmatpush1.msra.mxu0 %v591
        %597 = vmatprep.subr.mxu0 0.0
        %598 = vmatpush1.msra.mxu0 0.0
        %599 = vmatprep.subr.mxu0 0.0
        %600 = vmatpush1.msra.mxu0 0.0
        %601 = vmatprep.subr.mxu0 0.0
        %602 = vmatpush1.msra.mxu0 0.0
        %603 = vmatprep.subr.mxu0 0.0
        %604 = vmatpush1.msra.mxu0 0.0
        %605 = vmatprep.subr.mxu0 0.0
        %606 = vmatpush1.msra.mxu0 0.0
        %607 = vmatprep.subr.mxu0 0.0
        %608 = vmatpush1.msra.mxu0 0.0
        %609 = vmatprep.subr.mxu0 0.0
        %610 = vmatpush1.msra.mxu0 0.0
        %611 = vmatprep.subr.mxu0 0.0
        %612 = vmatpush1.msra.mxu0 0.0
        %613 = vmatprep.subr.mxu0 0.0
        %614 = vmatpush1.msra.mxu0 0.0
        %615 = vmatprep.subr.mxu0 0.0
        %616 = vmatpush1.msra.mxu0 0.0
        %617 = vmatprep.subr.mxu0 0.0
        %618 = vmatpush1.msra.mxu0 0.0
        %619 = vmatprep.subr.mxu0 0.0
        %620 = vmatpush1.msra.mxu0 0.0
        %621 = vmatprep.subr.mxu0 0.0
        %622 = vmatpush1.msra.mxu0 0.0
        %623 = vmatprep.subr.mxu0 0.0
        %624 = vmatpush1.msra.mxu0 0.0
        %625 = vmatprep.subr.mxu0 0.0
        %626 = vmatpush1.msra.mxu0 0.0
        %627 = vmatprep.subr.mxu0 0.0
        %628 = vmatpush1.msra.mxu0 0.0
        %629 = vmatprep.subr.mxu0 0.0
        %630 = vmatpush1.msra.mxu0 0.0
        %631 = vmatprep.subr.mxu0 0.0
        %632 = vmatpush1.msra.mxu0 0.0
        %633 = vmatprep.subr.mxu0 0.0
        %634 = vmatpush1.msra.mxu0 0.0
        %635 = vmatprep.subr.mxu0 0.0
        %636 = vmatpush1.msra.mxu0 0.0
        %637 = vmatprep.subr.mxu0 0.0
        %638 = vmatpush1.msra.mxu0 0.0
        %639 = vmatprep.subr.mxu0 0.0
        %640 = vmatpush1.msra.mxu0 0.0
        %641 = vmatprep.subr.mxu0 0.0
        %642 = vmatpush1.msra.mxu0 0.0
        %643 = vmatprep.subr.mxu0 0.0
        %644 = vmatpush1.msra.mxu0 0.0
        %645 = vmatprep.subr.mxu0 0.0
        %646 = vmatpush1.msra.mxu0 0.0
        %647 = vmatprep.subr.mxu0 0.0
        %648 = vmatpush1.msra.mxu0 0.0
        %649 = vmatprep.subr.mxu0 0.0
        %650 = vmatpush1.msra.mxu0 0.0
        %651 = vmatprep.subr.mxu0 0.0
        %652 = vmatpush1.msra.mxu0 0.0
        %653 = vmatprep.subr.mxu0 0.0
        %654 = vmatpush1.msra.mxu0 0.0
        %655 = vmatprep.subr.mxu0 0.0
        %656 = vmatpush1.msra.mxu0 0.0
        %657 = vmatprep.subr.mxu0 0.0
        %658 = vmatpush1.msra.mxu0 0.0
        %659 = vmatprep.mubr.f32.mxu0 0.0
        %660 = vmatmul.mubr.f32.gmra.mrb[0].mxu0 %v589
        %v661 = vpop.f32.mrb[0].mxu0
        %v662 = vadd.f32 0.0, %v661
        %v663 = vpop.f32.mrb[0].mxu0
        %v664 = vadd.f32 0.0, %v663
        %665 = vdwg.mxu0
        %v666 = vadd.f32 %v586, %v662
        %v667 = vadd.f32 %v587, %v664
        %668 = vrot.lane.b32.xlu0 %v180, 127
        %v669 = vpop.permute.xlu0 %668
        %670 = vrot.lane.b32.xlu0 %v198, 127
        %v671 = vpop.permute.xlu0 %670
        %vm672 = vcmp.lt.s32.totalorder %v191, 127
        %v673 = vsel %vm672, %v669, %v671
        %v674 = vsel %vm672, %v671, %v669
        %v675 = vsel %vm401, 1, 0
        %v676 = vsel %vm402, 1, 0
        %vm677 = vcmp.eq.s32.totalorder %v675, 1
        %vm678 = vcmp.eq.s32.totalorder %v676, 1
        %v679 = vsel %vm677, %v673, 0.0
        %v680 = vsel %vm678, %v674, 0.0
        %v682 = vsel %vm232, %v186, 0
        %v685 = vsel %vm236, %v679, 0
        %v688 = vsel %vm236, %v680, 0
        %690 = vmatprep.subr.mxu0 %v688
        %691 = vmatpush1.msra.mxu0 %v685
        %692 = vmatprep.subr.mxu0 0.0
        %693 = vmatpush1.msra.mxu0 0.0
        %694 = vmatprep.subr.mxu0 0.0
        %695 = vmatpush1.msra.mxu0 0.0
        %696 = vmatprep.subr.mxu0 0.0
        %697 = vmatpush1.msra.mxu0 0.0
        %698 = vmatprep.subr.mxu0 0.0
        %699 = vmatpush1.msra.mxu0 0.0
        %700 = vmatprep.subr.mxu0 0.0
        %701 = vmatpush1.msra.mxu0 0.0
        %702 = vmatprep.subr.mxu0 0.0
        %703 = vmatpush1.msra.mxu0 0.0
        %704 = vmatprep.subr.mxu0 0.0
        %705 = vmatpush1.msra.mxu0 0.0
        %706 = vmatprep.subr.mxu0 0.0
        %707 = vmatpush1.msra.mxu0 0.0
        %708 = vmatprep.subr.mxu0 0.0
        %709 = vmatpush1.msra.mxu0 0.0
        %710 = vmatprep.subr.mxu0 0.0
        %711 = vmatpush1.msra.mxu0 0.0
        %712 = vmatprep.subr.mxu0 0.0
        %713 = vmatpush1.msra.mxu0 0.0
        %714 = vmatprep.subr.mxu0 0.0
        %715 = vmatpush1.msra.mxu0 0.0
        %716 = vmatprep.subr.mxu0 0.0
        %717 = vmatpush1.msra.mxu0 0.0
        %718 = vmatprep.subr.mxu0 0.0
        %719 = vmatpush1.msra.mxu0 0.0
        %720 = vmatprep.subr.mxu0 0.0
        %721 = vmatpush1.msra.mxu0 0.0
        %722 = vmatprep.subr.mxu0 0.0
        %723 = vmatpush1.msra.mxu0 0.0
        %724 = vmatprep.subr.mxu0 0.0
        %725 = vmatpush1.msra.mxu0 0.0
        %726 = vmatprep.subr.mxu0 0.0
        %727 = vmatpush1.msra.mxu0 0.0
        %728 = vmatprep.subr.mxu0 0.0
        %729 = vmatpush1.msra.mxu0 0.0
        %730 = vmatprep.subr.mxu0 0.0
        %731 = vmatpush1.msra.mxu0 0.0
        %732 = vmatprep.subr.mxu0 0.0
        %733 = vmatpush1.msra.mxu0 0.0
        %734 = vmatprep.subr.mxu0 0.0
        %735 = vmatpush1.msra.mxu0 0.0
        %736 = vmatprep.subr.mxu0 0.0
        %737 = vmatpush1.msra.mxu0 0.0
        %738 = vmatprep.subr.mxu0 0.0
        %739 = vmatpush1.msra.mxu0 0.0
        %740 = vmatprep.subr.mxu0 0.0
        %741 = vmatpush1.msra.mxu0 0.0
        %742 = vmatprep.subr.mxu0 0.0
        %743 = vmatpush1.msra.mxu0 0.0
        %744 = vmatprep.subr.mxu0 0.0
        %745 = vmatpush1.msra.mxu0 0.0
        %746 = vmatprep.subr.mxu0 0.0
        %747 = vmatpush1.msra.mxu0 0.0
        %748 = vmatprep.subr.mxu0 0.0
        %749 = vmatpush1.msra.mxu0 0.0
        %750 = vmatprep.subr.mxu0 0.0
        %751 = vmatpush1.msra.mxu0 0.0
        %752 = vmatprep.subr.mxu0 0.0
        %753 = vmatpush1.msra.mxu0 0.0
        %754 = vmatprep.mubr.f32.mxu0 0.0
        %755 = vmatmul.mubr.f32.gmra.mrb[0].mxu0 %v682
        %v756 = vpop.f32.mrb[0].mxu0
        %v757 = vadd.f32 0.0, %v756
        %v758 = vpop.f32.mrb[0].mxu0
        %v759 = vadd.f32 0.0, %v758
        %760 = vdwg.mxu0
        %v761 = vadd.f32 %v666, %v757
        %v762 = vadd.f32 %v667, %v759
        %763 = vrot.lane.b32.xlu0 %v180, 113
        %v764 = vpop.permute.xlu0 %763
        %765 = vrot.lane.b32.xlu0 %v198, 113
        %v766 = vpop.permute.xlu0 %765
        %vm767 = vcmp.lt.s32.totalorder %v191, 113
        %v768 = vsel %vm767, %v764, %v766
        %v769 = vsel %vm767, %v766, %v764
        %vm770 = vcmp.lt.s32.totalorder %v195, 15
        %vm771 = vcmp.lt.s32.totalorder %v196, 15
        %vm772 = vmand %vm770, %vm209
        %vm773 = vmand %vm771, %vm210
        %v774 = vsel %vm772, 1, 0
        %v775 = vsel %vm773, 1, 0
        %vm776 = vcmp.eq.s32.totalorder %v774, 1
        %vm777 = vcmp.eq.s32.totalorder %v775, 1
        %v778 = vsel %vm776, %v768, 0.0
        %v779 = vsel %vm777, %v769, 0.0
        %v781 = vsel %vm232, %v187, 0
        %v784 = vsel %vm236, %v778, 0
        %v787 = vsel %vm236, %v779, 0
        %789 = vmatprep.subr.mxu0 %v787
        %790 = vmatpush1.msra.mxu0 %v784
        %791 = vmatprep.subr.mxu0 0.0
        %792 = vmatpush1.msra.mxu0 0.0
        %793 = vmatprep.subr.mxu0 0.0
        %794 = vmatpush1.msra.mxu0 0.0
        %795 = vmatprep.subr.mxu0 0.0
        %796 = vmatpush1.msra.mxu0 0.0
        %797 = vmatprep.subr.mxu0 0.0
        %798 = vmatpush1.msra.mxu0 0.0
        %799 = vmatprep.subr.mxu0 0.0
        %800 = vmatpush1.msra.mxu0 0.0
        %801 = vmatprep.subr.mxu0 0.0
        %802 = vmatpush1.msra.mxu0 0.0
        %803 = vmatprep.subr.mxu0 0.0
        %804 = vmatpush1.msra.mxu0 0.0
        %805 = vmatprep.subr.mxu0 0.0
        %806 = vmatpush1.msra.mxu0 0.0
        %807 = vmatprep.subr.mxu0 0.0
        %808 = vmatpush1.msra.mxu0 0.0
        %809 = vmatprep.subr.mxu0 0.0
        %810 = vmatpush1.msra.mxu0 0.0
        %811 = vmatprep.subr.mxu0 0.0
        %812 = vmatpush1.msra.mxu0 0.0
        %813 = vmatprep.subr.mxu0 0.0
        %814 = vmatpush1.msra.mxu0 0.0
        %815 = vmatprep.subr.mxu0 0.0
        %816 = vmatpush1.msra.mxu0 0.0
        %817 = vmatprep.subr.mxu0 0.0
        %818 = vmatpush1.msra.mxu0 0.0
        %819 = vmatprep.subr.mxu0 0.0
        %820 = vmatpush1.msra.mxu0 0.0
        %821 = vmatprep.subr.mxu0 0.0
        %822 = vmatpush1.msra.mxu0 0.0
        %823 = vmatprep.subr.mxu0 0.0
        %824 = vmatpush1.msra.mxu0 0.0
        %825 = vmatprep.subr.mxu0 0.0
        %826 = vmatpush1.msra.mxu0 0.0
        %827 = vmatprep.subr.mxu0 0.0
        %828 = vmatpush1.msra.mxu0 0.0
        %829 = vmatprep.subr.mxu0 0.0
        %830 = vmatpush1.msra.mxu0 0.0
        %831 = vmatprep.subr.mxu0 0.0
        %832 = vmatpush1.msra.mxu0 0.0
        %833 = vmatprep.subr.mxu0 0.0
        %834 = vmatpush1.msra.mxu0 0.0
        %835 = vmatprep.subr.mxu0 0.0
        %836 = vmatpush1.msra.mxu0 0.0
        %837 = vmatprep.subr.mxu0 0.0
        %838 = vmatpush1.msra.mxu0 0.0
        %839 = vmatprep.subr.mxu0 0.0
        %840 = vmatpush1.msra.mxu0 0.0
        %841 = vmatprep.subr.mxu0 0.0
        %842 = vmatpush1.msra.mxu0 0.0
        %843 = vmatprep.subr.mxu0 0.0
        %844 = vmatpush1.msra.mxu0 0.0
        %845 = vmatprep.subr.mxu0 0.0
        %846 = vmatpush1.msra.mxu0 0.0
        %847 = vmatprep.subr.mxu0 0.0
        %848 = vmatpush1.msra.mxu0 0.0
        %849 = vmatprep.subr.mxu0 0.0
        %850 = vmatpush1.msra.mxu0 0.0
        %851 = vmatprep.subr.mxu0 0.0
        %852 = vmatpush1.msra.mxu0 0.0
        %853 = vmatprep.mubr.f32.mxu0 0.0
        %854 = vmatmul.mubr.f32.gmra.mrb[0].mxu0 %v781
        %v855 = vpop.f32.mrb[0].mxu0
        %v856 = vadd.f32 0.0, %v855
        %v857 = vpop.f32.mrb[0].mxu0
        %v858 = vadd.f32 0.0, %v857
        %859 = vdwg.mxu0
        %v860 = vadd.f32 %v761, %v856
        %v861 = vadd.f32 %v762, %v858
        %862 = vrot.lane.b32.xlu0 %v180, 112
        %v863 = vpop.permute.xlu0 %862
        %864 = vrot.lane.b32.xlu0 %v198, 112
        %v865 = vpop.permute.xlu0 %864
        %vm866 = vcmp.lt.s32.totalorder %v191, 112
        %v867 = vsel %vm866, %v863, %v865
        %v868 = vsel %vm866, %v865, %v863
        %v869 = vsel %vm770, 1, 0
        %v870 = vsel %vm771, 1, 0
        %vm871 = vcmp.eq.s32.totalorder %v869, 1
        %vm872 = vcmp.eq.s32.totalorder %v870, 1
        %v873 = vsel %vm871, %v867, 0.0
        %v874 = vsel %vm872, %v868, 0.0
        %v876 = vsel %vm232, %v188, 0
        %v879 = vsel %vm236, %v873, 0
        %v882 = vsel %vm236, %v874, 0
        %884 = vmatprep.subr.mxu0 %v882
        %885 = vmatpush1.msra.mxu0 %v879
        %886 = vmatprep.subr.mxu0 0.0
        %887 = vmatpush1.msra.mxu0 0.0
        %888 = vmatprep.subr.mxu0 0.0
        %889 = vmatpush1.msra.mxu0 0.0
        %890 = vmatprep.subr.mxu0 0.0
        %891 = vmatpush1.msra.mxu0 0.0
        %892 = vmatprep.subr.mxu0 0.0
        %893 = vmatpush1.msra.mxu0 0.0
        %894 = vmatprep.subr.mxu0 0.0
        %895 = vmatpush1.msra.mxu0 0.0
        %896 = vmatprep.subr.mxu0 0.0
        %897 = vmatpush1.msra.mxu0 0.0
        %898 = vmatprep.subr.mxu0 0.0
        %899 = vmatpush1.msra.mxu0 0.0
        %900 = vmatprep.subr.mxu0 0.0
        %901 = vmatpush1.msra.mxu0 0.0
        %902 = vmatprep.subr.mxu0 0.0
        %903 = vmatpush1.msra.mxu0 0.0
        %904 = vmatprep.subr.mxu0 0.0
        %905 = vmatpush1.msra.mxu0 0.0
        %906 = vmatprep.subr.mxu0 0.0
        %907 = vmatpush1.msra.mxu0 0.0
        %908 = vmatprep.subr.mxu0 0.0
        %909 = vmatpush1.msra.mxu0 0.0
        %910 = vmatprep.subr.mxu0 0.0
        %911 = vmatpush1.msra.mxu0 0.0
        %912 = vmatprep.subr.mxu0 0.0
        %913 = vmatpush1.msra.mxu0 0.0
        %914 = vmatprep.subr.mxu0 0.0
        %915 = vmatpush1.msra.mxu0 0.0
        %916 = vmatprep.subr.mxu0 0.0
        %917 = vmatpush1.msra.mxu0 0.0
        %918 = vmatprep.subr.mxu0 0.0
        %919 = vmatpush1.msra.mxu0 0.0
        %920 = vmatprep.subr.mxu0 0.0
        %921 = vmatpush1.msra.mxu0 0.0
        %922 = vmatprep.subr.mxu0 0.0
        %923 = vmatpush1.msra.mxu0 0.0
        %924 = vmatprep.subr.mxu0 0.0
        %925 = vmatpush1.msra.mxu0 0.0
        %926 = vmatprep.subr.mxu0 0.0
        %927 = vmatpush1.msra.mxu0 0.0
        %928 = vmatprep.subr.mxu0 0.0
        %929 = vmatpush1.msra.mxu0 0.0
        %930 = vmatprep.subr.mxu0 0.0
        %931 = vmatpush1.msra.mxu0 0.0
        %932 = vmatprep.subr.mxu0 0.0
        %933 = vmatpush1.msra.mxu0 0.0
        %934 = vmatprep.subr.mxu0 0.0
        %935 = vmatpush1.msra.mxu0 0.0
        %936 = vmatprep.subr.mxu0 0.0
        %937 = vmatpush1.msra.mxu0 0.0
        %938 = vmatprep.subr.mxu0 0.0
        %939 = vmatpush1.msra.mxu0 0.0
        %940 = vmatprep.subr.mxu0 0.0
        %941 = vmatpush1.msra.mxu0 0.0
        %942 = vmatprep.subr.mxu0 0.0
        %943 = vmatpush1.msra.mxu0 0.0
        %944 = vmatprep.subr.mxu0 0.0
        %945 = vmatpush1.msra.mxu0 0.0
        %946 = vmatprep.subr.mxu0 0.0
        %947 = vmatpush1.msra.mxu0 0.0
        %948 = vmatprep.mubr.f32.mxu0 0.0
        %949 = vmatmul.mubr.f32.gmra.mrb[0].mxu0 %v876
        %v950 = vpop.f32.mrb[0].mxu0
        %v951 = vadd.f32 0.0, %v950
        %v952 = vpop.f32.mrb[0].mxu0
        %v953 = vadd.f32 0.0, %v952
        %954 = vdwg.mxu0
        %v955 = vadd.f32 %v860, %v951
        %v956 = vadd.f32 %v861, %v953
        %957 = vrot.lane.b32.xlu0 %v180, 111
        %v958 = vpop.permute.xlu0 %957
        %959 = vrot.lane.b32.xlu0 %v198, 111
        %v960 = vpop.permute.xlu0 %959
        %vm961 = vcmp.lt.s32.totalorder %v191, 111
        %v962 = vsel %vm961, %v958, %v960
        %v963 = vsel %vm961, %v960, %v958
        %vm964 = vmand %vm770, %vm401
        %vm965 = vmand %vm771, %vm402
        %v966 = vsel %vm964, 1, 0
        %v967 = vsel %vm965, 1, 0
        %vm968 = vcmp.eq.s32.totalorder %v966, 1
        %vm969 = vcmp.eq.s32.totalorder %v967, 1
        %v970 = vsel %vm968, %v962, 0.0
        %v971 = vsel %vm969, %v963, 0.0
        %v973 = vsel %vm232, %v189, 0
        %v976 = vsel %vm236, %v970, 0
        %v979 = vsel %vm236, %v971, 0
        %981 = vmatprep.subr.mxu0 %v979
        %982 = vmatpush1.msra.mxu0 %v976
        %983 = vmatprep.subr.mxu0 0.0
        %984 = vmatpush1.msra.mxu0 0.0
        %985 = vmatprep.subr.mxu0 0.0
        %986 = vmatpush1.msra.mxu0 0.0
        %987 = vmatprep.subr.mxu0 0.0
        %988 = vmatpush1.msra.mxu0 0.0
        %989 = vmatprep.subr.mxu0 0.0
        %990 = vmatpush1.msra.mxu0 0.0
        %991 = vmatprep.subr.mxu0 0.0
        %992 = vmatpush1.msra.mxu0 0.0
        %993 = vmatprep.subr.mxu0 0.0
        %994 = vmatpush1.msra.mxu0 0.0
        %995 = vmatprep.subr.mxu0 0.0
        %996 = vmatpush1.msra.mxu0 0.0
        %997 = vmatprep.subr.mxu0 0.0
        %998 = vmatpush1.msra.mxu0 0.0
        %999 = vmatprep.subr.mxu0 0.0
        %1000 = vmatpush1.msra.mxu0 0.0
        %1001 = vmatprep.subr.mxu0 0.0
        %1002 = vmatpush1.msra.mxu0 0.0
        %1003 = vmatprep.subr.mxu0 0.0
        %1004 = vmatpush1.msra.mxu0 0.0
        %1005 = vmatprep.subr.mxu0 0.0
        %1006 = vmatpush1.msra.mxu0 0.0
        %1007 = vmatprep.subr.mxu0 0.0
        %1008 = vmatpush1.msra.mxu0 0.0
        %1009 = vmatprep.subr.mxu0 0.0
        %1010 = vmatpush1.msra.mxu0 0.0
        %1011 = vmatprep.subr.mxu0 0.0
        %1012 = vmatpush1.msra.mxu0 0.0
        %1013 = vmatprep.subr.mxu0 0.0
        %1014 = vmatpush1.msra.mxu0 0.0
        %1015 = vmatprep.subr.mxu0 0.0
        %1016 = vmatpush1.msra.mxu0 0.0
        %1017 = vmatprep.subr.mxu0 0.0
        %1018 = vmatpush1.msra.mxu0 0.0
        %1019 = vmatprep.subr.mxu0 0.0
        %1020 = vmatpush1.msra.mxu0 0.0
        %1021 = vmatprep.subr.mxu0 0.0
        %1022 = vmatpush1.msra.mxu0 0.0
        %1023 = vmatprep.subr.mxu0 0.0
        %1024 = vmatpush1.msra.mxu0 0.0
        %1025 = vmatprep.subr.mxu0 0.0
        %1026 = vmatpush1.msra.mxu0 0.0
        %1027 = vmatprep.subr.mxu0 0.0
        %1028 = vmatpush1.msra.mxu0 0.0
        %1029 = vmatprep.subr.mxu0 0.0
        %1030 = vmatpush1.msra.mxu0 0.0
        %1031 = vmatprep.subr.mxu0 0.0
        %1032 = vmatpush1.msra.mxu0 0.0
        %1033 = vmatprep.subr.mxu0 0.0
        %1034 = vmatpush1.msra.mxu0 0.0
        %1035 = vmatprep.subr.mxu0 0.0
        %1036 = vmatpush1.msra.mxu0 0.0
        %1037 = vmatprep.subr.mxu0 0.0
        %1038 = vmatpush1.msra.mxu0 0.0
        %1039 = vmatprep.subr.mxu0 0.0
        %1040 = vmatpush1.msra.mxu0 0.0
        %1041 = vmatprep.subr.mxu0 0.0
        %1042 = vmatpush1.msra.mxu0 0.0
        %1043 = vmatprep.subr.mxu0 0.0
        %1044 = vmatpush1.msra.mxu0 0.0
        %1045 = vmatprep.mubr.f32.mxu0 0.0
        %1046 = vmatmul.mubr.f32.gmra.mrb[0].mxu0 %v973
        %v1047 = vpop.f32.mrb[0].mxu0
        %v1048 = vadd.f32 0.0, %v1047
        %v1049 = vpop.f32.mrb[0].mxu0
        %v1050 = vadd.f32 0.0, %v1049
        %1051 = vdwg.mxu0
        %v1052 = vadd.f32 %v955, %v1048
        %v1053 = vadd.f32 %v956, %v1050
        %1054 = vst [vmem:[%s164] sm:$0xff] %v1052
        %1055 = vst [vmem:[%s164 + $0x8] sm:$0xff] %v1053
        %v1056 = vadd.f32 %v1052, %v1053
        %1057 = vadd.xlane.f32.xlu0 %v1056
        %v1058 = vpop.xlane.xlu0 %1057
        %v1059 = vmul.f32 %v1058, 0.00390625
        %v1060 = vsub.f32 %v1052, %v1059
        %v1061 = vsub.f32 %v1053, %v1059
        %v1062 = vmul.f32 %v1060, %v1060
        %v1063 = vmul.f32 %v1061, %v1061
        %v1064 = vadd.f32 %v1062, %v1063
        %1065 = vadd.xlane.f32.xlu0 %v1064
        %v1066 = vpop.xlane.xlu0 %1065
        %vm1067 = vcmask 7168
        %v1068 = vsel %vm1067, %v1058, %v1066
        %vm1069 = vcmask 15360
        %1070 = vst.msk [vmem:[%s179] sm:$0xff] %vm1069, %v1068
        %s1071 = sand.u32 %s73, 1
        %s1072 = scalar_lea.sflag [#allocation3], %s1071
        %s1073 = sand.u32 %s73, 1
        %s1074 = smul.addr %s1073, 16
        %s1075 = scalar_lea.vmem [#allocation2], %s1074
        %p1076 = scmp.lt.s32.totalorder %s18, 1
        %s1077 = scalar_select %p1076, %s18, 1
        %s1078 = smul.addr %s1077, 8
        %s1079 = scalar_lea.vmem %s3, %s1078
        // Predicated region
        $region29: #{tpu_custom_call.1} parent=27 // pred_check
          %p1080 = pneg %p83
        $region30: #{tpu_custom_call.1} parent=27 // pred_check_branch
          %1082 = sbr.rel (%p1080) target = $region32
        $region31: #{tpu_custom_call.1} parent=27 // pred_region
          %s1084 = ssub.s32 256, 256
          %1085 = vsyncadd %s1072, %s1084
          %s1086 = smul.addr %s18, 2
          %s1087 = smul.addr %s1086, 128
          %s1088 = scalar_lea.hbm %s2, %s1087
          %s1090 = sshll.u32 %s1075, 4
          %s1091 = int_to_ptr.vmem [resolvable:$true] %s1090
          %1093 = dma.vmem_to_hbm [thread:$0]  %s1091, 256, %s1088, %s1072
        $region32: #{tpu_custom_call.1} parent=27 // pred_fallthru
          _
        // Predicated region
        $region33: #{tpu_custom_call.1} parent=27 // pred_check
          %p1094 = pneg %p109
        $region34: #{tpu_custom_call.1} parent=27 // pred_check_branch
          %1096 = sbr.rel (%p1094) target = $region36
        $region35: #{tpu_custom_call.1} parent=27 // pred_region
          _
        $region36: #{tpu_custom_call.1} parent=27 // pred_fallthru
          _
      $region28: #{tpu_custom_call.1} parent=5 // pred_fallthru
        _
      %p1097 = scmp.le.s32.totalorder 2, %s13
      // Predicated region
      $region37: #{tpu_custom_call.1} parent=5 // pred_check
        %p1098 = pneg %p1097
      $region38: #{tpu_custom_call.1} parent=5 // pred_check_branch
        %1100 = sbr.rel (%p1098) target = $region40
      $region39: #{tpu_custom_call.1} parent=5 // pred_region
        %s1101 = ssub.s32 %s13, 2
        // Predicated region
        $region41: #{tpu_custom_call.1} parent=39 // pred_check
          %p1102 = pneg %p89
        $region42: #{tpu_custom_call.1} parent=39 // pred_check_branch
          %1104 = sbr.rel (%p1102) target = $region44
        $region43: #{tpu_custom_call.1} parent=39 // pred_region
          %s1105 = sand.u32 %s74, 1
          %s1106 = scalar_lea.sflag [#allocation3], %s1105
          %s1107 = sand.u32 %s74, 1
          %s1108 = smul.addr %s1107, 16
          %s1109 = scalar_lea.vmem [#allocation2], %s1108
          %1110 = dma.done %s1106, 256
        $region44: #{tpu_custom_call.1} parent=39 // pred_fallthru
          _
        // Predicated region
        $region45: #{tpu_custom_call.1} parent=39 // pred_check
          %p1111 = pneg %p115
        $region46: #{tpu_custom_call.1} parent=39 // pred_check_branch
          %1113 = sbr.rel (%p1111) target = $region48
        $region47: #{tpu_custom_call.1} parent=39 // pred_region
          %p1114 = scmp.lt.s32.totalorder %s19, 1
          %s1115 = scalar_select %p1114, %s19, 1
          %s1116 = smul.addr %s1115, 8
          %s1117 = scalar_lea.vmem %s3, %s1116
        $region48: #{tpu_custom_call.1} parent=39 // pred_fallthru
          _
      $region40: #{tpu_custom_call.1} parent=5 // pred_fallthru
        _
    $region6: #{tpu_custom_call.1} parent=1 // loop_footer
      %s17 = sadd.s32 1, %s13
    $region7: #{tpu_custom_call.1} parent=1 // loop_footer_branch
      %12 = sbr.rel target = $region3
    $region8: #{tpu_custom_call.1} parent=1 // loop_exit
      _
    %1118 = vsyncpa [#allocation3], 1
    %s1119 = scalar_lea.sflag [#allocation3], 1
    %1120 = vsyncpa %s1119, 1

</llo_original>
